<compile_context>
chip_gen: v5e
topology: v5e:2x2
jax: 0.10.0
libtpu: 0.0.40
codegen_flags: <defaults>
</compile_context>

<pallas_src>
import functools

import jax
import jax.numpy as jnp
from jax.experimental import pallas as pl
from jax.experimental.pallas import tpu as pltpu


# ----------------------------------------------------------------------------
# Kernel
# ----------------------------------------------------------------------------
def _chatglm2_mlp_kernel(x_ref, w1_ref, b1_ref, w2_ref, b2_ref, o_ref, acc_ref):
    """One (row-tile i, inter-chunk k) step of the fused MLP.

    x_ref : (tm, C)         native dtype
    w1_ref: (C, 2*tn)       fused [gate | up] chunk k of W1^T (interleaved layout)
    b1_ref: (1, 2*tn) f32   fused [gate | up] bias chunk k
    w2_ref: (tn, C)         W2^T rows for chunk k
    b2_ref: (1, C)   f32
    o_ref : (tm, C)         output tile (resident across k)
    acc_ref: (tm, C) f32    scratch accumulator
    """
    k = pl.program_id(1)

    @pl.when(k == 0)
    def _init():
        acc_ref[...] = jnp.zeros_like(acc_ref)

    x = x_ref[...]  # keep native dtype; MXU accumulates in f32 below

    # Single fused MXU pass for gate and up: (tm, C) @ (C, 2*tn) -> f32
    h = jnp.dot(x, w1_ref[...], preferred_element_type=jnp.float32)
    h = h + b1_ref[...]

    half = h.shape[-1] // 2            # static; 128-aligned slice boundary
    gate = h[:, :half]
    up = h[:, half:]

    # swiglu in f32, then back to native dtype for the second MXU pass.
    act = (gate * jax.nn.sigmoid(gate)) * up
    act = act.astype(w2_ref.dtype)

    acc_ref[...] += jnp.dot(act, w2_ref[...], preferred_element_type=jnp.float32)

    @pl.when(k == pl.num_programs(1) - 1)
    def _finalize():
        o_ref[...] = (acc_ref[...] + b2_ref[...]).astype(o_ref.dtype)


# ----------------------------------------------------------------------------
# Helpers
# ----------------------------------------------------------------------------
def _round_up(x, q):
    return ((x + q - 1) // q) * q


def _device_defaults():
    """Per-TPU-generation tile / VMEM defaults (review: compute-bound thresholds)."""
    try:
        kind = jax.devices()[0].device_kind.lower()
    except Exception:  # pragma: no cover
        kind = ""
    if "v7" in kind:
        return {"tm": 512, "vmem": 56 * 1024 * 1024}    # 64 MiB physical VMEM
    if "v6" in kind:
        return {"tm": 1024, "vmem": 100 * 1024 * 1024}  # 128 MiB physical VMEM
    if "v5" in kind:
        return {"tm": 512, "vmem": 96 * 1024 * 1024}    # 128 MiB physical VMEM
    # Unknown device: conservative (fits the smallest VMEM generation).
    return {"tm": 512, "vmem": 56 * 1024 * 1024}


def prepare_chatglm2_mlp_params(w1, b1, w2, b2, *, inter_block=512):
    """One-time weight re-layout + padding (call OUTSIDE the jitted forward).

    w1: (2*inter, n_embd)  PyTorch Linear weight (out, in)
    b1: (2*inter,)
    w2: (n_embd, inter)
    b2: (n_embd,)

    Returns (w1f, b1f, w2t, b2r, inter_block):
      w1f: (C, 2*inter_pad)  per-chunk interleaved [gate_k | up_k | gate_k+1 | ...]
      b1f: (1, 2*inter_pad)  f32, same interleaved layout
      w2t: (inter_pad, C)    zero-padded rows
      b2r: (1, C)            f32
      inter_block: the chunk size tn the kernel must use.
    """
    two_inter, n_embd = w1.shape
    inter = two_inter // 2
    assert w2.shape == (n_embd, inter)

    # Effective chunk: multiple of 128, no larger than the (rounded-up) inter dim.
    inter_block = max(128, (min(inter_block, _round_up(inter, 128)) // 128) * 128)
    inter_pad = _round_up(inter, inter_block)
    n_blk = inter_pad // inter_block
    pad = inter_pad - inter

    w1_t = jnp.transpose(w1)                  # (C, 2*inter)
    wg = w1_t[:, :inter]                      # gate half
    wu = w1_t[:, inter:]                      # up half
    if pad:
        wg = jnp.pad(wg, ((0, 0), (0, pad)))  # zero gate cols -> silu(0)*up = 0
        wu = jnp.pad(wu, ((0, 0), (0, pad)))
    wg_b = wg.reshape(n_embd, n_blk, inter_block)
    wu_b = wu.reshape(n_embd, n_blk, inter_block)
    # (C, n_blk, [gate|up], inter_block) -> (C, 2*inter_pad)
    w1f = jnp.stack([wg_b, wu_b], axis=2).reshape(n_embd, 2 * inter_pad)

    bg = b1[:inter].astype(jnp.float32)
    bu = b1[inter:].astype(jnp.float32)
    if pad:
        bg = jnp.pad(bg, (0, pad))
        bu = jnp.pad(bu, (0, pad))
    b1f = jnp.stack([bg.reshape(n_blk, inter_block),
                     bu.reshape(n_blk, inter_block)],
                    axis=1).reshape(1, 2 * inter_pad)

    w2t = jnp.transpose(w2)                   # (inter, C)
    if pad:
        w2t = jnp.pad(w2t, ((0, pad), (0, 0)))  # zero rows -> no contribution
    b2r = b2.astype(jnp.float32).reshape(1, n_embd)

    return w1f, b1f, w2t, b2r, int(inter_block)


# ----------------------------------------------------------------------------
# Jitted pallas_call wrapper
# ----------------------------------------------------------------------------
@functools.partial(jax.jit, static_argnames=("tm", "tn", "vmem_limit_bytes"))
def _chatglm2_mlp_call(x, w1f, b1f, w2t, b2r, *, tm, tn, vmem_limit_bytes):
    B, T, C = x.shape
    M = B * T
    M_pad = _round_up(M, tm)
    inter_pad = w2t.shape[0]
    assert inter_pad % tn == 0
    n_k = inter_pad // tn

    x2d = x.reshape(M, C)
    if M_pad != M:
        x2d = jnp.pad(x2d, ((0, M_pad - M), (0, 0)))

    grid = (M_pad // tm, n_k)

    # Advisory cost estimate so XLA schedules neighbours around this call.
    w_bytes = (w1f.size * w1f.dtype.itemsize + w2t.size * w2t.dtype.itemsize)
    cost = pl.CostEstimate(
        flops=int(6 * M_pad * C * inter_pad),
        transcendentals=int(M_pad * inter_pad),
        bytes_accessed=int(w_bytes * (M_pad // tm)
                           + 2 * M_pad * C * x.dtype.itemsize
                           + b1f.size * 4 + b2r.size * 4),
    )

    out2d = pl.pallas_call(
        _chatglm2_mlp_kernel,
        out_shape=jax.ShapeDtypeStruct((M_pad, C), x.dtype),
        grid_spec=pltpu.PrefetchScalarGridSpec(
            num_scalar_prefetch=0,
            grid=grid,
            in_specs=[
                pl.BlockSpec((tm, C), lambda i, k: (i, 0)),        # x row tile
                pl.BlockSpec((C, 2 * tn), lambda i, k: (0, k)),    # fused W1^T chunk
                pl.BlockSpec((1, 2 * tn), lambda i, k: (0, k)),    # fused b1 chunk
                pl.BlockSpec((tn, C), lambda i, k: (k, 0)),        # W2^T chunk
                pl.BlockSpec((1, C), lambda i, k: (0, 0)),         # b2 (fetched once)
            ],
            out_specs=pl.BlockSpec((tm, C), lambda i, k: (i, 0)),
            scratch_shapes=[pltpu.VMEM((tm, C), jnp.float32)],
        ),
        compiler_params=pltpu.CompilerParams(
            dimension_semantics=("parallel", "arbitrary"),
            vmem_limit_bytes=vmem_limit_bytes),
        cost_estimate=cost,
    )(x2d, w1f, b1f, w2t, b2r)

    if M_pad != M:
        out2d = out2d[:M]
    return out2d.reshape(B, T, C)


def chatglm2_mlp(x, params, *, tm=None, vmem_limit_bytes=None):
    """x: (B, T, n_embd); params from prepare_chatglm2_mlp_params."""
    w1f, b1f, w2t, b2r, inter_block = params
    B, T, C = x.shape
    M = B * T

    dflt = _device_defaults()
    if vmem_limit_bytes is None:
        vmem_limit_bytes = dflt["vmem"]

    # Dtype-aware row quantum: bf16 packs 2 rows per sublane, int8/fp8 packs 4.
    itemsize = jnp.dtype(x.dtype).itemsize
    row_q = {4: 8, 2: 16, 1: 32}.get(itemsize, 8)

    tm_pref = dflt["tm"] if tm is None else tm
    if M <= tm_pref:
        tm = _round_up(max(M, 1), row_q)
    else:
        tm = _round_up(tm_pref, row_q)

    return _chatglm2_mlp_call(x, w1f, b1f, w2t, b2r,
                              tm=int(tm), tn=int(inter_block),
                              vmem_limit_bytes=int(vmem_limit_bytes))


# ----------------------------------------------------------------------------
# Reference + test
# ----------------------------------------------------------------------------
def _reference_mlp(x, w1, b1, w2, b2):
    h = x @ w1.T + b1
    a, b = jnp.split(h, 2, axis=-1)
    g = jax.nn.silu(a) * b
    return g @ w2.T + b2


if __name__ == "__main__":
    # Small config: n_embd=32, intermediate_size=64, bias=True
    n_embd = 32
    intermediate = 64

    key = jax.random.PRNGKey(0)
    kx, k1, k2, k3, k4, kx2 = jax.random.split(key, 6)

    # PyTorch nn.Linear stores weight as (out_features, in_features).
    w1 = jax.random.normal(k1, (2 * intermediate, n_embd), jnp.float32) * 0.05
    w2 = jax.random.normal(k2, (n_embd, intermediate), jnp.float32) * 0.05
    b1 = jax.random.normal(k3, (2 * intermediate,), jnp.float32) * 0.01
    b2 = jax.random.normal(k4, (n_embd,), jnp.float32) * 0.01

    # One-time parameter re-layout + padding (outside the jitted forward).
    params = prepare_chatglm2_mlp_params(w1, b1, w2, b2)

    # Case 1: aligned M.
    B, T = 2, 8
    x = jax.random.normal(kx, (B, T, n_embd), dtype=jnp.float32)
    out = jax.block_until_ready(chatglm2_mlp(x, params))
    ref = _reference_mlp(x, w1, b1, w2, b2)
    assert out.shape == (B, T, n_embd)
    err1 = float(jnp.max(jnp.abs(out - ref)))
    assert jnp.allclose(out, ref, atol=1e-4, rtol=1e-4), err1

    # Case 2: ragged M (exercises the row-padding path).
    x2 = jax.random.normal(kx2, (1, 5, n_embd), dtype=jnp.float32)
    out2 = jax.block_until_ready(chatglm2_mlp(x2, params))
    ref2 = _reference_mlp(x2, w1, b1, w2, b2)
    err2 = float(jnp.max(jnp.abs(out2 - ref2)))
    assert jnp.allclose(out2, ref2, atol=1e-4, rtol=1e-4), err2

    print("KERNEL_OK")
</pallas_src>

<mosaic_0001>
module attributes {stable_mosaic.version = 11 : i64} {
  func.func @_chatglm2_mlp_kernel(%arg0: i32, %arg1: i32, %arg2: memref<16x32xf32, #tpu.memory_space<vmem>>, %arg3: memref<32x256xf32, #tpu.memory_space<vmem>>, %arg4: memref<1x256xf32, #tpu.memory_space<vmem>>, %arg5: memref<128x32xf32, #tpu.memory_space<vmem>>, %arg6: memref<1x32xf32, #tpu.memory_space<vmem>>, %arg7: memref<16x32xf32, #tpu.memory_space<vmem>>, %arg8: memref<16x32xf32, #tpu.memory_space<vmem>>) attributes {dimension_semantics = [#tpu.dimension_semantics<parallel>, #tpu.dimension_semantics<arbitrary>], iteration_bounds = array<i64: 1, 1>, scalar_prefetch = 0 : i64, scratch_operands = 1 : i64, tpu.core_type = #tpu.core_type<tc>, window_params = [{transform_indices = @transform_0, window_bounds = array<i64: 16, 32>}, {transform_indices = @transform_1, window_bounds = array<i64: 32, 256>}, {transform_indices = @transform_2, window_bounds = array<i64: 1, 256>}, {transform_indices = @transform_3, window_bounds = array<i64: 128, 32>}, {pipeline_mode = #tpu.pipeline_mode<synchronous>, transform_indices = @transform_4, window_bounds = array<i64: 1, 32>}, {transform_indices = @transform_5, window_bounds = array<i64: 16, 32>}]} {
    %c0_i32 = arith.constant 0 : i32
    %0 = arith.cmpi eq, %arg1, %c0_i32 : i32
    %1 = arith.extui %0 : i1 to i32
    %c0_i32_0 = arith.constant 0 : i32
    %2 = arith.cmpi ne, %1, %c0_i32_0 : i32
    scf.if %2 {
      %cst_16 = arith.constant 0.000000e+00 : f32
      %26 = vector.broadcast %cst_16 : f32 to vector<16x32xf32>
      %c0_17 = arith.constant 0 : index
      %c0_18 = arith.constant 0 : index
      %27 = vector.load %arg8[%c0_17, %c0_18] : memref<16x32xf32, #tpu.memory_space<vmem>>, vector<16x32xf32>
      tpu.vector_store %arg8[%c0_17, %c0_18], %26 {strides = array<i32>} : memref<16x32xf32, #tpu.memory_space<vmem>>, vector<16x32xf32>,
    } else {
    }
    %c0 = arith.constant 0 : index
    %c0_1 = arith.constant 0 : index
    %3 = vector.load %arg2[%c0, %c0_1] : memref<16x32xf32, #tpu.memory_space<vmem>>, vector<16x32xf32>
    %c0_2 = arith.constant 0 : index
    %c0_3 = arith.constant 0 : index
    %4 = vector.load %arg3[%c0_2, %c0_3] : memref<32x256xf32, #tpu.memory_space<vmem>>, vector<32x256xf32>
    %cst = arith.constant dense<0.000000e+00> : vector<16x256xf32>
    %5 = tpu.matmul %3, %4, %cst {dimension_numbers = #tpu.dot_dimension_numbers<[1], [0], [0], [1], [0, 0, 1, 1], [], []>} : vector<16x32xf32>, vector<32x256xf32>, vector<16x256xf32> -> vector<16x256xf32>
    %c0_4 = arith.constant 0 : index
    %c0_5 = arith.constant 0 : index
    %6 = vector.load %arg4[%c0_4, %c0_5] : memref<1x256xf32, #tpu.memory_space<vmem>>, vector<1x256xf32>
    %7 = vector.broadcast %6 : vector<1x256xf32> to vector<16x256xf32>
    %8 = arith.addf %5, %7 : vector<16x256xf32>
    %9 = vector.extract_strided_slice %8 {offsets = [0, 0], sizes = [16, 128], strides = [1, 1]} : vector<16x256xf32> to vector<16x128xf32>
    %10 = vector.extract_strided_slice %8 {offsets = [0, 128], sizes = [16, 128], strides = [1, 1]} : vector<16x256xf32> to vector<16x128xf32>
    %11 = arith.negf %9 : vector<16x128xf32>
    %12 = math.exp %11 : vector<16x128xf32>
    %cst_6 = arith.constant 1.000000e+00 : f32
    %13 = vector.broadcast %cst_6 : f32 to vector<16x128xf32>
    %14 = arith.addf %13, %12 : vector<16x128xf32>
    %15 = arith.divf %13, %14 : vector<16x128xf32>
    %16 = arith.mulf %9, %15 : vector<16x128xf32>
    %17 = arith.mulf %16, %10 : vector<16x128xf32>
    %c0_7 = arith.constant 0 : index
    %c0_8 = arith.constant 0 : index
    %18 = vector.load %arg8[%c0_7, %c0_8] : memref<16x32xf32, #tpu.memory_space<vmem>>, vector<16x32xf32>
    %c0_9 = arith.constant 0 : index
    %c0_10 = arith.constant 0 : index
    %19 = vector.load %arg5[%c0_9, %c0_10] : memref<128x32xf32, #tpu.memory_space<vmem>>, vector<128x32xf32>
    %cst_11 = arith.constant dense<0.000000e+00> : vector<16x32xf32>
    %20 = tpu.matmul %17, %19, %cst_11 {dimension_numbers = #tpu.dot_dimension_numbers<[1], [0], [0], [1], [0, 0, 1, 1], [], []>} : vector<16x128xf32>, vector<128x32xf32>, vector<16x32xf32> -> vector<16x32xf32>
    %21 = arith.addf %18, %20 : vector<16x32xf32>
    %c0_12 = arith.constant 0 : index
    %c0_13 = arith.constant 0 : index
    %22 = vector.load %arg8[%c0_12, %c0_13] : memref<16x32xf32, #tpu.memory_space<vmem>>, vector<16x32xf32>
    tpu.vector_store %arg8[%c0_12, %c0_13], %21 {strides = array<i32>} : memref<16x32xf32, #tpu.memory_space<vmem>>, vector<16x32xf32>,
    %c0_i32_14 = arith.constant 0 : i32
    %23 = arith.cmpi eq, %arg1, %c0_i32_14 : i32
    %24 = arith.extui %23 : i1 to i32
    %c0_i32_15 = arith.constant 0 : i32
    %25 = arith.cmpi ne, %24, %c0_i32_15 : i32
    scf.if %25 {
      %c0_16 = arith.constant 0 : index
      %c0_17 = arith.constant 0 : index
      %26 = vector.load %arg8[%c0_16, %c0_17] : memref<16x32xf32, #tpu.memory_space<vmem>>, vector<16x32xf32>
      %c0_18 = arith.constant 0 : index
      %c0_19 = arith.constant 0 : index
      %27 = vector.load %arg6[%c0_18, %c0_19] : memref<1x32xf32, #tpu.memory_space<vmem>>, vector<1x32xf32>
      %28 = vector.broadcast %27 : vector<1x32xf32> to vector<16x32xf32>
      %29 = arith.addf %26, %28 : vector<16x32xf32>
      %c0_20 = arith.constant 0 : index
      %c0_21 = arith.constant 0 : index
      %30 = vector.load %arg7[%c0_20, %c0_21] : memref<16x32xf32, #tpu.memory_space<vmem>>, vector<16x32xf32>
      tpu.vector_store %arg7[%c0_20, %c0_21], %29 {strides = array<i32>} : memref<16x32xf32, #tpu.memory_space<vmem>>, vector<16x32xf32>,
    } else {
    }
    return
  }
  func.func @transform_0(%arg0: i32, %arg1: i32) -> (i32, i32) {
    %c0_i32 = arith.constant 0 : i32
    %c0_i32_0 = arith.constant 0 : i32
    return %arg0, %c0_i32 : i32, i32
  }
  func.func @transform_1(%arg0: i32, %arg1: i32) -> (i32, i32) {
    %c0_i32 = arith.constant 0 : i32
    %c0_i32_0 = arith.constant 0 : i32
    return %c0_i32, %arg1 : i32, i32
  }
  func.func @transform_2(%arg0: i32, %arg1: i32) -> (i32, i32) {
    %c0_i32 = arith.constant 0 : i32
    %c0_i32_0 = arith.constant 0 : i32
    return %c0_i32, %arg1 : i32, i32
  }
  func.func @transform_3(%arg0: i32, %arg1: i32) -> (i32, i32) {
    %c0_i32 = arith.constant 0 : i32
    %c0_i32_0 = arith.constant 0 : i32
    return %arg1, %c0_i32 : i32, i32
  }
  func.func @transform_4(%arg0: i32, %arg1: i32) -> (i32, i32) {
    %c0_i32 = arith.constant 0 : i32
    %c0_i32_0 = arith.constant 0 : i32
    %c0_i32_1 = arith.constant 0 : i32
    return %c0_i32, %c0_i32_0 : i32, i32
  }
  func.func @transform_5(%arg0: i32, %arg1: i32) -> (i32, i32) {
    %c0_i32 = arith.constant 0 : i32
    %c0_i32_0 = arith.constant 0 : i32
    return %arg0, %c0_i32 : i32, i32
  }
}

</mosaic_0001>

<llo_original>
// kernel: _chatglm2_mlp_call.1
$region0: #{_chatglm2_mlp_call.1}
  #allocation0 [shape = 'u32[]', space=smem, size = 0x4, offset = 0x4, fixed_abs, tag = 'smem constant byte address 0x4 - core index']
  #allocation1 [shape = 'u32[72,128]{1,0:T(1,128)}', space=vmem, size = 0x9000, scoped, tag = 'internal scratch']
  #allocation2 [shape = 'f32[16,32]{1,0:T(8,128)}', space=vmem, size = 0x2000, scoped, tag = 'scratch operand']
  %s0 = inlined_call_operand.vmem [shape: f32[16,32], index: 0, kind: input, shape index: {}]
  %s1 = inlined_call_operand.vmem [shape: f32[32,256], index: 1, kind: input, shape index: {}]
  %s2 = inlined_call_operand.vmem [shape: f32[1,256], index: 2, kind: input, shape index: {}]
  %s3 = inlined_call_operand.vmem [shape: f32[128,32], index: 3, kind: input, shape index: {}]
  %s4 = inlined_call_operand.vmem [shape: f32[1,32], index: 4, kind: input, shape index: {}]
  %s5 = inlined_call_operand.hbm [shape: f32[16,32], index: 5, kind: output, shape index: {}]
  %s6 = sld [smem:[#allocation0]]
  $region38: #{_chatglm2_mlp_call.1} parent=0
    _
  %s8 = ssub.s32 1, %s6
  %s9 = scalar_select 0, %s8, %s6
  $region1: #{_chatglm2_mlp_call.1} parent=0
    #allocation3 [shape = 'u8[8192]{0}', space=vmem, size = 0x2000, scoped, tag = 'output window, operand 0, single buffered']
    #allocation4 [shape = 's32[1]{0}', space=sflag, size = 0x4, scoped, tag = 'scoped memory for _chatglm2_mlp_call.1']
    %10 = vsyncpa [#allocation4], 0
    // Predicated region
    $region2: #{_chatglm2_mlp_call.1} parent=1 // pred_check
      _
    $region3: #{_chatglm2_mlp_call.1} parent=1 // pred_check_branch
      %12 = sbr.rel (0) target = $region5
    $region4: #{_chatglm2_mlp_call.1} parent=1 // pred_region
      _
    $region5: #{_chatglm2_mlp_call.1} parent=1 // pred_fallthru
      _
    // Predicated region
    $region6: #{_chatglm2_mlp_call.1} parent=1 // pred_check
      _
    $region7: #{_chatglm2_mlp_call.1} parent=1 // pred_check_branch
      %14 = sbr.rel (0) target = $region9
    $region8: #{_chatglm2_mlp_call.1} parent=1 // pred_region
      _
    $region9: #{_chatglm2_mlp_call.1} parent=1 // pred_fallthru
      _
    // Predicated region
    $region10: #{_chatglm2_mlp_call.1} parent=1 // pred_check
      _
    $region11: #{_chatglm2_mlp_call.1} parent=1 // pred_check_branch
      %16 = sbr.rel (0) target = $region13
    $region12: #{_chatglm2_mlp_call.1} parent=1 // pred_region
      _
    $region13: #{_chatglm2_mlp_call.1} parent=1 // pred_fallthru
      _
    // Predicated region
    $region14: #{_chatglm2_mlp_call.1} parent=1 // pred_check
      _
    $region15: #{_chatglm2_mlp_call.1} parent=1 // pred_check_branch
      %18 = sbr.rel (0) target = $region17
    $region16: #{_chatglm2_mlp_call.1} parent=1 // pred_region
      _
    $region17: #{_chatglm2_mlp_call.1} parent=1 // pred_fallthru
      _
    // Predicated region
    $region18: #{_chatglm2_mlp_call.1} parent=1 // pred_check
      _
    $region19: #{_chatglm2_mlp_call.1} parent=1 // pred_check_branch
      %20 = sbr.rel (0) target = $region21
    $region20: #{_chatglm2_mlp_call.1} parent=1 // pred_region
      _
    $region21: #{_chatglm2_mlp_call.1} parent=1 // pred_fallthru
      _
    %p21 = scmp.eq.s32.totalorder 0, 0
    // Predicated region
    $region22: #{_chatglm2_mlp_call.1} parent=1 // pred_check
      %p22 = pneg %p21
    $region23: #{_chatglm2_mlp_call.1} parent=1 // pred_check_branch
      %24 = sbr.rel (%p22) target = $region25
    $region24: #{_chatglm2_mlp_call.1} parent=1 // pred_region
      %vm25 = vcmask 261120
      %26 = vst.msk [vmem:[#allocation2] sm:$0xff] %vm25, 0.0
      %27 = vst.msk [vmem:[#allocation2 + $0x8] sm:$0xff] %vm25, 0.0
    $region25: #{_chatglm2_mlp_call.1} parent=1 // pred_fallthru
      _
    %v28 = vld [vmem:[%s0] sm:$0xff]
    %v29 = vld [vmem:[%s0 + $0x8] sm:$0xff]
    %v30 = vld [vmem:[%s1] sm:$0xff]
    %v31 = vld [vmem:[%s1 + $0x8] sm:$0xff]
    %v32 = vld [vmem:[%s1 + $0x10] sm:$0xff]
    %v33 = vld [vmem:[%s1 + $0x18] sm:$0xff]
    %v34 = vld [vmem:[%s1 + $0x20] sm:$0xff]
    %v35 = vld [vmem:[%s1 + $0x28] sm:$0xff]
    %v36 = vld [vmem:[%s1 + $0x30] sm:$0xff]
    %v37 = vld [vmem:[%s1 + $0x38] sm:$0xff]
    %v38 = vld [vmem:[%s2] sm:$0x3]
    %v40 = vperm.slane %v38, 0
    %v41 = vperm.slane %v38, 1
    %vm44 = vcmask 261120
    %v46 = vsel %vm44, %v28, 0
    %v49 = vsel %vm44, %v29, 0
    %51 = vmatpush.msra.mxu0 0.0
    %52 = vmatpush.msra.mxu0 0.0
    %53 = vmatpush.msra.mxu0 0.0
    %54 = vmatpush.msra.mxu0 0.0
    %55 = vmatpush.msra.mxu0 0.0
    %56 = vmatpush.msra.mxu0 0.0
    %57 = vmatpush.msra.mxu0 0.0
    %58 = vmatpush.msra.mxu0 0.0
    %59 = vmatpush.msra.mxu0 0.0
    %60 = vmatpush.msra.mxu0 0.0
    %61 = vmatpush.msra.mxu0 0.0
    %62 = vmatpush.msra.mxu0 0.0
    %63 = vmatpush.msra.mxu0 %v36
    %64 = vmatpush.msra.mxu0 %v34
    %65 = vmatpush.msra.mxu0 %v32
    %66 = vmatpush.msra.mxu0 %v30
    %67 = vmatmul.f32.gmra.mxu0 %v46
    %v68 = vpop.f32.mrf.mxu0
    %v69 = vadd.f32 %v40, %v68
    %70 = vmatmul.f32.gmra.mxu0 %v49
    %v71 = vpop.f32.mrf.mxu0
    %v72 = vadd.f32 %v40, %v71
    %73 = vdwg.mxu0
    %74 = vmatpush.msra.mxu0 0.0
    %75 = vmatpush.msra.mxu0 0.0
    %76 = vmatpush.msra.mxu0 0.0
    %77 = vmatpush.msra.mxu0 0.0
    %78 = vmatpush.msra.mxu0 0.0
    %79 = vmatpush.msra.mxu0 0.0
    %80 = vmatpush.msra.mxu0 0.0
    %81 = vmatpush.msra.mxu0 0.0
    %82 = vmatpush.msra.mxu0 0.0
    %83 = vmatpush.msra.mxu0 0.0
    %84 = vmatpush.msra.mxu0 0.0
    %85 = vmatpush.msra.mxu0 0.0
    %86 = vmatpush.msra.mxu0 %v37
    %87 = vmatpush.msra.mxu0 %v35
    %88 = vmatpush.msra.mxu0 %v33
    %89 = vmatpush.msra.mxu0 %v31
    %90 = vmatmul.f32.gmra.mxu0 %v46
    %v91 = vpop.f32.mrf.mxu0
    %v92 = vadd.f32 %v41, %v91
    %93 = vmatmul.f32.gmra.mxu0 %v49
    %v94 = vpop.f32.mrf.mxu0
    %v95 = vadd.f32 %v41, %v94
    %96 = vdwg.mxu0
    %v97 = vxor.u32 %v69, 2147483648
    %v98 = vxor.u32 %v72, 2147483648
    %v99 = vmul.f32 %v97, 1.442695
    %v100 = vpow.pop %v99
    %v101 = vmul.f32 %v98, 1.442695
    %v102 = vpow.pop %v101
    %v103 = vadd.f32 %v100, 1.0
    %v104 = vadd.f32 %v102, 1.0
    %v105 = vrcp.pop %v103
    %v106 = vmul.f32 %v103, %v105
    %v107 = vsub.f32 1.0, %v106
    %v108 = vmul.f32 %v105, %v107
    %v109 = vadd.f32 %v105, %v108
    %vm110 = vweird.f32 %v103
    %vm111 = vweird.f32 %v105
    %vm112 = vmor %vm110, %vm111
    %v113 = vsel %vm112, %v105, %v109
    %v114 = vand.u32 2147483647, %v103
    %vm115 = vcmp.eq.f32.partialorder %v114, 8.507059e+37
    %v116 = vand.u32 %v103, 2147483648
    %v117 = vor.u32 1.1754944e-38, %v116
    %v118 = vsel %vm115, %v117, %v113
    %v119 = vmul.f32 1.0, %v118
    %v120 = vrcp.pop %v104
    %v121 = vmul.f32 %v104, %v120
    %v122 = vsub.f32 1.0, %v121
    %v123 = vmul.f32 %v120, %v122
    %v124 = vadd.f32 %v120, %v123
    %vm125 = vweird.f32 %v104
    %vm126 = vweird.f32 %v120
    %vm127 = vmor %vm125, %vm126
    %v128 = vsel %vm127, %v120, %v124
    %v129 = vand.u32 2147483647, %v104
    %vm130 = vcmp.eq.f32.partialorder %v129, 8.507059e+37
    %v131 = vand.u32 %v104, 2147483648
    %v132 = vor.u32 1.1754944e-38, %v131
    %v133 = vsel %vm130, %v132, %v128
    %v134 = vmul.f32 1.0, %v133
    %v135 = vmul.f32 %v69, %v119
    %v136 = vmul.f32 %v72, %v134
    %v137 = vmul.f32 %v135, %v92
    %v138 = vmul.f32 %v136, %v95
    %v139 = vld [vmem:[#allocation2] sm:$0xff]
    %v140 = vld [vmem:[#allocation2 + $0x8] sm:$0xff]
    %v141 = vld [vmem:[%s3] sm:$0xff]
    %v142 = vld [vmem:[%s3 + $0x8] sm:$0xff]
    %v143 = vld [vmem:[%s3 + $0x10] sm:$0xff]
    %v144 = vld [vmem:[%s3 + $0x18] sm:$0xff]
    %v145 = vld [vmem:[%s3 + $0x20] sm:$0xff]
    %v146 = vld [vmem:[%s3 + $0x28] sm:$0xff]
    %v147 = vld [vmem:[%s3 + $0x30] sm:$0xff]
    %v148 = vld [vmem:[%s3 + $0x38] sm:$0xff]
    %v149 = vld [vmem:[%s3 + $0x40] sm:$0xff]
    %v150 = vld [vmem:[%s3 + $0x48] sm:$0xff]
    %v151 = vld [vmem:[%s3 + $0x50] sm:$0xff]
    %v152 = vld [vmem:[%s3 + $0x58] sm:$0xff]
    %v153 = vld [vmem:[%s3 + $0x60] sm:$0xff]
    %v154 = vld [vmem:[%s3 + $0x68] sm:$0xff]
    %v155 = vld [vmem:[%s3 + $0x70] sm:$0xff]
    %v156 = vld [vmem:[%s3 + $0x78] sm:$0xff]
    %157 = vmatpush.msra.mxu0 %v156
    %158 = vmatpush.msra.mxu0 %v155
    %159 = vmatpush.msra.mxu0 %v154
    %160 = vmatpush.msra.mxu0 %v153
    %161 = vmatpush.msra.mxu0 %v152
    %162 = vmatpush.msra.mxu0 %v151
    %163 = vmatpush.msra.mxu0 %v150
    %164 = vmatpush.msra.mxu0 %v149
    %165 = vmatpush.msra.mxu0 %v148
    %166 = vmatpush.msra.mxu0 %v147
    %167 = vmatpush.msra.mxu0 %v146
    %168 = vmatpush.msra.mxu0 %v145
    %169 = vmatpush.msra.mxu0 %v144
    %170 = vmatpush.msra.mxu0 %v143
    %171 = vmatpush.msra.mxu0 %v142
    %172 = vmatpush.msra.mxu0 %v141
    %173 = vmatmul.f32.gmra.mxu0 %v137
    %v174 = vpop.f32.mrf.mxu0
    %v175 = vadd.f32 0.0, %v174
    %176 = vmatmul.f32.gmra.mxu0 %v138
    %v177 = vpop.f32.mrf.mxu0
    %v178 = vadd.f32 0.0, %v177
    %179 = vdwg.mxu0
    %v180 = vadd.f32 %v139, %v175
    %v181 = vadd.f32 %v140, %v178
    %182 = vst.msk [vmem:[#allocation2] sm:$0xff] %vm44, %v180
    %183 = vst.msk [vmem:[#allocation2 + $0x8] sm:$0xff] %vm44, %v181
    // Predicated region
    $region26: #{_chatglm2_mlp_call.1} parent=1 // pred_check
      %p184 = pneg %p21
    $region27: #{_chatglm2_mlp_call.1} parent=1 // pred_check_branch
      %186 = sbr.rel (%p184) target = $region29
    $region28: #{_chatglm2_mlp_call.1} parent=1 // pred_region
      %v187 = vld [vmem:[#allocation2] sm:$0xff]
      %v188 = vld [vmem:[#allocation2 + $0x8] sm:$0xff]
      %v189 = vld [vmem:[%s4] sm:$0x1]
      %v191 = vperm.slane %v189, 0
      %v193 = vadd.f32 %v187, %v191
      %v194 = vadd.f32 %v188, %v191
      %195 = vst.msk [vmem:[#allocation3] sm:$0xff] %vm44, %v193
      %196 = vst.msk [vmem:[#allocation3 + $0x8] sm:$0xff] %vm44, %v194
    $region29: #{_chatglm2_mlp_call.1} parent=1 // pred_fallthru
      _
    // Predicated region
    $region30: #{_chatglm2_mlp_call.1} parent=1 // pred_check
      _
    $region31: #{_chatglm2_mlp_call.1} parent=1 // pred_check_branch
      %198 = sbr.rel (0) target = $region33
    $region32: #{_chatglm2_mlp_call.1} parent=1 // pred_region
      %200 = vsyncadd [#allocation4], 0
      %s201 = sshll.u32 [#allocation3], 4
      %s202 = int_to_ptr.vmem [resolvable:$true] %s201
      %s203 = sshll.u32 %s5, 4
      %s204 = int_to_ptr.hbm [resolvable:$true] %s203
      %209 = dma.vmem_to_hbm [thread:$0]  %s202, 256, %s204, [#allocation4], 128, 128, 8
    $region33: #{_chatglm2_mlp_call.1} parent=1 // pred_fallthru
      _
    // Predicated region
    $region34: #{_chatglm2_mlp_call.1} parent=1 // pred_check
      _
    $region35: #{_chatglm2_mlp_call.1} parent=1 // pred_check_branch
      %211 = sbr.rel (0) target = $region37
    $region36: #{_chatglm2_mlp_call.1} parent=1 // pred_region
      %213 = dma.done [#allocation4], 256
    $region37: #{_chatglm2_mlp_call.1} parent=1 // pred_fallthru
      _
    %214 = vsyncpa [#allocation4], 1

</llo_original>
